<compile_context>
chip_gen: v7x
topology: tpu7x:2x2x1
jax: 0.10.0
libtpu: 0.0.40
codegen_flags: <defaults>
</compile_context>

<pallas_src>
import functools

import jax
import jax.numpy as jnp
from jax.experimental import pallas as pl
from jax.experimental.pallas import tpu as pltpu

_LANES = 128


def _layernorm1d_kernel(x_ref, w_ref, b_ref, o_ref, *, eps, inv_n):
    # x_ref: (TB, R, 128) lane-dense block of TB samples.
    # w_ref/b_ref: (R, 128) periodic per-channel affine params (VMEM-resident).
    x = x_ref[...].astype(jnp.float32)                       # (TB, R, 128)

    # One pass over x for both statistics (padded tail is zero -> contributes 0).
    s1 = jnp.sum(x, axis=(1, 2), keepdims=True)              # (TB, 1, 1)
    s2 = jnp.sum(x * x, axis=(1, 2), keepdims=True)          # (TB, 1, 1)
    u = s1 * inv_n                                           # per-sample mean
    var = jnp.maximum(s2 * inv_n - u * u, 0.0)               # guard cancellation
    inv = jax.lax.rsqrt(var + eps)                           # (TB, 1, 1)

    w = w_ref[...].astype(jnp.float32)                       # (R, 128)
    b = b_ref[...].astype(jnp.float32)                       # (R, 128)

    # Folded affine: out = x * (w * inv) + (b - u * w * inv)   (2 FMAs + 1 mul)
    scale = w * inv                                          # (TB, R, 128)
    shift = b - u * scale                                    # (TB, R, 128)
    o_ref[...] = (x * scale + shift).astype(o_ref.dtype)


def _pick_block_batch(B, sample_bytes, target_bytes=4 << 20):
    """Largest divisor of B whose block fits ~target_bytes; keep grid >= 2 if possible."""
    divs = [d for d in range(1, B + 1) if B % d == 0]
    fitting = [d for d in divs if d * sample_bytes <= target_bytes] or [1]
    tb = max(fitting)
    # Prefer at least 2 grid steps so both v7x TensorCores get work.
    if B > 1 and B // tb < 2:
        smaller = [d for d in fitting if B // d >= 2]
        if smaller:
            tb = max(smaller)
    return tb


def layernorm1d(x, weight, bias, eps=1e-6):
    """x: (B, L, C); weight, bias: (C,). Matches LayerNorm1d.forward."""
    B, L, C = x.shape
    N = L * C
    P = ((N + _LANES - 1) // _LANES) * _LANES      # pad flat length to lane width
    pad = P - N
    R = P // _LANES

    # Lane-dense layout: flatten (L, C) and view as (R, 128).
    x_flat = x.reshape(B, N)
    w_flat = jnp.tile(weight, L)
    b_flat = jnp.tile(bias, L)
    if pad:
        x_flat = jnp.pad(x_flat, ((0, 0), (0, pad)))
        w_flat = jnp.pad(w_flat, (0, pad))
        b_flat = jnp.pad(b_flat, (0, pad))
    x3 = x_flat.reshape(B, R, _LANES)
    w2 = w_flat.reshape(R, _LANES)
    b2 = b_flat.reshape(R, _LANES)

    # Batch-block size: amortize grid overhead, stay within a VMEM budget.
    sample_bytes = R * _LANES * x.dtype.itemsize
    tb = _pick_block_batch(B, sample_bytes)
    grid = (B // tb,)

    # Explicit VMEM budget: double-buffered in + out blocks + resident params.
    block_bytes = tb * sample_bytes
    param_bytes = 2 * R * _LANES * jnp.dtype(weight.dtype).itemsize
    needed = 4 * block_bytes + 2 * param_bytes + (4 << 20)
    vmem_limit = int(min(max(needed, 32 << 20), 48 << 20))   # safe on v5e/v6e/v7x

    kernel = functools.partial(_layernorm1d_kernel, eps=eps, inv_n=1.0 / N)

    out3 = pl.pallas_call(
        kernel,
        out_shape=jax.ShapeDtypeStruct((B, R, _LANES), x.dtype),
        grid_spec=pltpu.PrefetchScalarGridSpec(
            num_scalar_prefetch=0,
            grid=grid,
            in_specs=[
                pl.BlockSpec((tb, R, _LANES), lambda i: (i, 0, 0)),
                pl.BlockSpec((R, _LANES), lambda i: (0, 0)),   # VMEM-resident params
                pl.BlockSpec((R, _LANES), lambda i: (0, 0)),
            ],
            out_specs=pl.BlockSpec((tb, R, _LANES), lambda i: (i, 0, 0)),
        ),
        compiler_params=pltpu.CompilerParams(
            dimension_semantics=("parallel",),
            vmem_limit_bytes=vmem_limit,
        ),
    )(x3, w2, b2)

    out = out3.reshape(B, P)
    if pad:
        out = out[:, :N]
    return out.reshape(B, L, C)


def _reference(x, weight, bias, eps=1e-6):
    u = jnp.mean(x, axis=(1, 2), keepdims=True)
    s = jnp.mean((x - u) ** 2, axis=(1, 2), keepdims=True)
    xn = (x - u) / jnp.sqrt(s + eps)
    return weight[None, None, :] * xn + bias[None, None, :]


if __name__ == "__main__":
    key = jax.random.PRNGKey(0)
    B, L, C = 2, 8, 32

    x = jax.random.normal(key, (B, L, C), dtype=jnp.float32)

    # Deterministic param init matching nn.Parameter(torch.ones/zeros(C)),
    # perturbed slightly so the affine path is exercised.
    weight = jnp.ones((C,), dtype=jnp.float32) + 0.01 * jnp.arange(C, dtype=jnp.float32)
    bias = jnp.zeros((C,), dtype=jnp.float32) + 0.001 * jnp.arange(C, dtype=jnp.float32)

    out = layernorm1d(x, weight, bias, eps=1e-6)
    out = jax.block_until_ready(out)

    ref = _reference(x, weight, bias, eps=1e-6)
    assert out.shape == (B, L, C)
    assert jnp.allclose(out, ref, atol=2e-5, rtol=2e-5)

    print("KERNEL_OK")
</pallas_src>

<mosaic_0001>
module attributes {stable_mosaic.version = 11 : i64} {
  func.func @_layernorm1d_kernel(%arg0: i32, %arg1: memref<1x2x128xf32, #tpu.memory_space<vmem>>, %arg2: memref<2x128xf32, #tpu.memory_space<vmem>>, %arg3: memref<2x128xf32, #tpu.memory_space<vmem>>, %arg4: memref<1x2x128xf32, #tpu.memory_space<vmem>>) attributes {dimension_semantics = [#tpu.dimension_semantics<parallel>], iteration_bounds = array<i64: 2>, scalar_prefetch = 0 : i64, scratch_operands = 0 : i64, tpu.core_type = #tpu.core_type<tc>, window_params = [{transform_indices = @transform_0, window_bounds = array<i64: 1, 2, 128>}, {pipeline_mode = #tpu.pipeline_mode<synchronous>, transform_indices = @transform_1, window_bounds = array<i64: 2, 128>}, {pipeline_mode = #tpu.pipeline_mode<synchronous>, transform_indices = @transform_2, window_bounds = array<i64: 2, 128>}, {transform_indices = @transform_3, window_bounds = array<i64: 1, 2, 128>}]} {
    %c0 = arith.constant 0 : index
    %c0_0 = arith.constant 0 : index
    %c0_1 = arith.constant 0 : index
    %0 = vector.load %arg1[%c0, %c0_0, %c0_1] : memref<1x2x128xf32, #tpu.memory_space<vmem>>, vector<1x2x128xf32>
    %cst = arith.constant dense<0.000000e+00> : vector<1xf32>
    %1 = vector.multi_reduction <add>, %0, %cst [1, 2] : vector<1x2x128xf32> to vector<1xf32>
    %2 = vector.shape_cast %1 : vector<1xf32> to vector<1x1x1xf32>
    %3 = arith.mulf %0, %0 : vector<1x2x128xf32>
    %cst_2 = arith.constant dense<0.000000e+00> : vector<1xf32>
    %4 = vector.multi_reduction <add>, %3, %cst_2 [1, 2] : vector<1x2x128xf32> to vector<1xf32>
    %5 = vector.shape_cast %4 : vector<1xf32> to vector<1x1x1xf32>
    %cst_3 = arith.constant 3.906250e-03 : f32
    %6 = vector.broadcast %cst_3 : f32 to vector<1x1x1xf32>
    %7 = arith.mulf %2, %6 : vector<1x1x1xf32>
    %cst_4 = arith.constant 3.906250e-03 : f32
    %8 = vector.broadcast %cst_4 : f32 to vector<1x1x1xf32>
    %9 = arith.mulf %5, %8 : vector<1x1x1xf32>
    %10 = arith.mulf %7, %7 : vector<1x1x1xf32>
    %11 = arith.subf %9, %10 : vector<1x1x1xf32>
    %cst_5 = arith.constant 0.000000e+00 : f32
    %12 = vector.broadcast %cst_5 : f32 to vector<1x1x1xf32>
    %13 = arith.maximumf %11, %12 : vector<1x1x1xf32>
    %cst_6 = arith.constant 9.99999997E-7 : f32
    %14 = vector.broadcast %cst_6 : f32 to vector<1x1x1xf32>
    %15 = arith.addf %13, %14 : vector<1x1x1xf32>
    %16 = math.rsqrt %15 : vector<1x1x1xf32>
    %c0_7 = arith.constant 0 : index
    %c0_8 = arith.constant 0 : index
    %17 = vector.load %arg2[%c0_7, %c0_8] : memref<2x128xf32, #tpu.memory_space<vmem>>, vector<2x128xf32>
    %c0_9 = arith.constant 0 : index
    %c0_10 = arith.constant 0 : index
    %18 = vector.load %arg3[%c0_9, %c0_10] : memref<2x128xf32, #tpu.memory_space<vmem>>, vector<2x128xf32>
    %19 = vector.shape_cast %17 : vector<2x128xf32> to vector<1x2x128xf32>
    %20 = vector.broadcast %16 : vector<1x1x1xf32> to vector<1x2x128xf32>
    %21 = arith.mulf %19, %20 : vector<1x2x128xf32>
    %22 = vector.broadcast %7 : vector<1x1x1xf32> to vector<1x2x128xf32>
    %23 = arith.mulf %22, %21 : vector<1x2x128xf32>
    %24 = vector.shape_cast %18 : vector<2x128xf32> to vector<1x2x128xf32>
    %25 = arith.subf %24, %23 : vector<1x2x128xf32>
    %26 = arith.mulf %0, %21 : vector<1x2x128xf32>
    %27 = arith.addf %26, %25 : vector<1x2x128xf32>
    %c0_11 = arith.constant 0 : index
    %c0_12 = arith.constant 0 : index
    %c0_13 = arith.constant 0 : index
    %28 = vector.load %arg4[%c0_11, %c0_12, %c0_13] : memref<1x2x128xf32, #tpu.memory_space<vmem>>, vector<1x2x128xf32>
    tpu.vector_store %arg4[%c0_11, %c0_12, %c0_13], %27 {strides = array<i32>} : memref<1x2x128xf32, #tpu.memory_space<vmem>>, vector<1x2x128xf32>,
    return
  }
  func.func @transform_0(%arg0: i32) -> (i32, i32, i32) {
    %c0_i32 = arith.constant 0 : i32
    %c0_i32_0 = arith.constant 0 : i32
    %c0_i32_1 = arith.constant 0 : i32
    return %arg0, %c0_i32, %c0_i32_0 : i32, i32, i32
  }
  func.func @transform_1(%arg0: i32) -> (i32, i32) {
    %c0_i32 = arith.constant 0 : i32
    %c0_i32_0 = arith.constant 0 : i32
    %c0_i32_1 = arith.constant 0 : i32
    return %c0_i32, %c0_i32_0 : i32, i32
  }
  func.func @transform_2(%arg0: i32) -> (i32, i32) {
    %c0_i32 = arith.constant 0 : i32
    %c0_i32_0 = arith.constant 0 : i32
    %c0_i32_1 = arith.constant 0 : i32
    return %c0_i32, %c0_i32_0 : i32, i32
  }
  func.func @transform_3(%arg0: i32) -> (i32, i32, i32) {
    %c0_i32 = arith.constant 0 : i32
    %c0_i32_0 = arith.constant 0 : i32
    %c0_i32_1 = arith.constant 0 : i32
    return %arg0, %c0_i32, %c0_i32_0 : i32, i32, i32
  }
}

</mosaic_0001>

<llo_original>
// kernel: tpu_custom_call.1
$region0: #{tpu_custom_call.1}
  #allocation0 [shape = 'u32[]', space=smem, size = 0x4, offset = 0x4, fixed_abs, tag = 'smem constant byte address 0x4 - core index']
  #allocation1 [shape = 'u32[144,128]{1,0:T(1,128)}', space=vmem, size = 0x12000, scoped, tag = 'internal scratch']
  %s0 = inlined_call_operand.hbm [shape: f32[2,2,128], index: 0, kind: input, shape index: {}]
  %s1 = inlined_call_operand.vmem [shape: f32[2,128], index: 1, kind: input, shape index: {}]
  %s2 = inlined_call_operand.vmem [shape: f32[2,128], index: 2, kind: input, shape index: {}]
  %s3 = inlined_call_operand.hbm [shape: f32[2,2,128], index: 3, kind: output, shape index: {}]
  %s4 = sld [smem:[#allocation0]]
  $region49: #{tpu_custom_call.1} parent=0
    _
  %s6 = ssub.s32 1, %s4
  %s7 = scalar_select 0, %s6, %s4
  $region1: #{tpu_custom_call.1} parent=0
    #allocation2 [shape = 'u8[2048]{0}', space=vmem, size = 0x800, scoped, tag = 'input window, operand 0']
    #allocation3 [shape = 's32[2]{0}', space=sflag, size = 0x8, scoped, tag = 'scoped memory for tpu_custom_call.1']
    #allocation4 [shape = 's32[2]{0}', space=sflag, size = 0x8, scoped, tag = 'scoped memory for tpu_custom_call.1']
    #allocation5 [shape = 'u8[2048]{0}', space=vmem, size = 0x800, scoped, tag = 'output window, operand 0']
    %8 = vsyncpa [#allocation3], 0
    %s9 = scalar_lea.sflag [#allocation3], 1
    %10 = vsyncpa %s9, 0
    %11 = vsyncpa [#allocation4], 0
    %s12 = scalar_lea.sflag [#allocation4], 1
    %13 = vsyncpa %s12, 0
    loop: start=0, step=1, limit=4
    $region2: #{tpu_custom_call.1} parent=1 // loop_pre_header
      _
    $region3: #{tpu_custom_call.1} parent=1 // loop_header
      %s15 = sphi 0, %s19
      %p16 = scmp.ge.s32.totalorder %s15, 4
      %s25 = sphi 0, %s27
      %s28 = sphi 0, %s25
      %s29 = sphi 0, %s28
      %s45 = sphi 0, %s29
      %s49 = sphi 0, %s49
      %s51 = sphi 0, %s49
      %s52 = sphi 0, %s51
      %s66 = sphi 0, %s52
      %s70 = sphi 0, %s70
      %s72 = sphi 0, %s70
      %s73 = sphi 0, %s72
      %s87 = sphi 0, %s73
      %s93 = sphi 0, %s95
      %s96 = sphi 0, %s93
      %s97 = sphi 0, %s96
      %s113 = sphi 0, %s97
    $region4: #{tpu_custom_call.1} parent=1 // loop_header_branch
      %18 = sbr.rel (%p16) target = $region8
    $region5: #{tpu_custom_call.1} parent=1 // loop_body
      %s20 = ssub.s32 %s15, 1
      %s21 = ssub.s32 %s15, 2
      %s22 = sadd.s32 %s15, 1
      %s23 = ssub.s32 %s15, %s22
      %p24 = scmp.eq.s32.totalorder %s23, 0
      %s26 = sadd.s32 %s25, 1
      %s27 = scalar_select %p24, %s25, %s26
      %p30 = pneg %p24
      %p31 = scmp.eq.s32.totalorder %s15, 1
      %p32 = por %p30, %p31
      %p33 = scmp.ne.s32.totalorder %s25, %s28
      %p34 = scmp.eq.s32.totalorder %s15, 0
      %p35 = por %p33, %p34
      %p36 = scmp.ne.s32.totalorder %s25, %s28
      %p37 = scmp.eq.s32.totalorder %s20, 1
      %p38 = por %p36, %p37
      %p39 = scmp.ne.s32.totalorder %s28, %s29
      %p40 = scmp.eq.s32.totalorder %s20, 0
      %p41 = por %p39, %p40
      %p42 = scmp.ne.s32.totalorder %s28, %s29
      %p43 = scmp.eq.s32.totalorder %s21, 1
      %p44 = por %p42, %p43
      %p46 = scmp.ne.s32.totalorder %s29, %s45
      %p47 = scmp.eq.s32.totalorder %s21, 0
      %p48 = por %p46, %p47
      %s50 = sadd.s32 %s49, 1
      %p53 = scmp.eq.s32.totalorder %s15, 1
      %p54 = scmp.ne.s32.totalorder %s49, %s51
      %p55 = scmp.eq.s32.totalorder %s15, 0
      %p56 = por %p54, %p55
      %p57 = scmp.ne.s32.totalorder %s49, %s51
      %p58 = scmp.eq.s32.totalorder %s20, 1
      %p59 = por %p57, %p58
      %p60 = scmp.ne.s32.totalorder %s51, %s52
      %p61 = scmp.eq.s32.totalorder %s20, 0
      %p62 = por %p60, %p61
      %p63 = scmp.ne.s32.totalorder %s51, %s52
      %p64 = scmp.eq.s32.totalorder %s21, 1
      %p65 = por %p63, %p64
      %p67 = scmp.ne.s32.totalorder %s52, %s66
      %p68 = scmp.eq.s32.totalorder %s21, 0
      %p69 = por %p67, %p68
      %s71 = sadd.s32 %s70, 1
      %p74 = scmp.eq.s32.totalorder %s15, 1
      %p75 = scmp.ne.s32.totalorder %s70, %s72
      %p76 = scmp.eq.s32.totalorder %s15, 0
      %p77 = por %p75, %p76
      %p78 = scmp.ne.s32.totalorder %s70, %s72
      %p79 = scmp.eq.s32.totalorder %s20, 1
      %p80 = por %p78, %p79
      %p81 = scmp.ne.s32.totalorder %s72, %s73
      %p82 = scmp.eq.s32.totalorder %s20, 0
      %p83 = por %p81, %p82
      %p84 = scmp.ne.s32.totalorder %s72, %s73
      %p85 = scmp.eq.s32.totalorder %s21, 1
      %p86 = por %p84, %p85
      %p88 = scmp.ne.s32.totalorder %s73, %s87
      %p89 = scmp.eq.s32.totalorder %s21, 0
      %p90 = por %p88, %p89
      %s91 = ssub.s32 %s15, %s22
      %p92 = scmp.eq.s32.totalorder %s91, 0
      %s94 = sadd.s32 %s93, 1
      %s95 = scalar_select %p92, %s93, %s94
      %p98 = pneg %p92
      %p99 = scmp.eq.s32.totalorder %s15, 1
      %p100 = por %p98, %p99
      %p101 = scmp.ne.s32.totalorder %s93, %s96
      %p102 = scmp.eq.s32.totalorder %s15, 0
      %p103 = por %p101, %p102
      %p104 = scmp.ne.s32.totalorder %s93, %s96
      %p105 = scmp.eq.s32.totalorder %s20, 1
      %p106 = por %p104, %p105
      %p107 = scmp.ne.s32.totalorder %s96, %s97
      %p108 = scmp.eq.s32.totalorder %s20, 0
      %p109 = por %p107, %p108
      %p110 = scmp.ne.s32.totalorder %s96, %s97
      %p111 = scmp.eq.s32.totalorder %s21, 1
      %p112 = por %p110, %p111
      %p114 = scmp.ne.s32.totalorder %s97, %s113
      %p115 = scmp.eq.s32.totalorder %s21, 0
      %p116 = por %p114, %p115
      %p117 = scmp.le.s32.totalorder 1, %s15
      %p118 = scmp.lt.s32.totalorder %s15, 3
      %p119 = pnand %p117, %p118
      %p120 = pneg %p119
      // Predicated region
      $region9: #{tpu_custom_call.1} parent=5 // pred_check
        _
      $region10: #{tpu_custom_call.1} parent=5 // pred_check_branch
        %122 = sbr.rel (%p119) target = $region12
      $region11: #{tpu_custom_call.1} parent=5 // pred_region
        %s123 = ssub.s32 %s15, 1
        // Predicated region
        $region13: #{tpu_custom_call.1} parent=11 // pred_check
          %p124 = pneg %p62
        $region14: #{tpu_custom_call.1} parent=11 // pred_check_branch
          %126 = sbr.rel (%p124) target = $region16
        $region15: #{tpu_custom_call.1} parent=11 // pred_region
          _
        $region16: #{tpu_custom_call.1} parent=11 // pred_fallthru
          _
        // Predicated region
        $region17: #{tpu_custom_call.1} parent=11 // pred_check
          %p127 = pneg %p83
        $region18: #{tpu_custom_call.1} parent=11 // pred_check_branch
          %129 = sbr.rel (%p127) target = $region20
        $region19: #{tpu_custom_call.1} parent=11 // pred_region
          _
        $region20: #{tpu_custom_call.1} parent=11 // pred_fallthru
          _
      $region12: #{tpu_custom_call.1} parent=5 // pred_fallthru
        _
      %p130 = scmp.lt.s32.totalorder %s15, 2
      // Predicated region
      $region21: #{tpu_custom_call.1} parent=5 // pred_check
        %p131 = pneg %p130
      $region22: #{tpu_custom_call.1} parent=5 // pred_check_branch
        %133 = sbr.rel (%p131) target = $region24
      $region23: #{tpu_custom_call.1} parent=5 // pred_region
        // Predicated region
        $region25: #{tpu_custom_call.1} parent=23 // pred_check
          %p134 = pneg %p35
        $region26: #{tpu_custom_call.1} parent=23 // pred_check_branch
          %136 = sbr.rel (%p134) target = $region28
        $region27: #{tpu_custom_call.1} parent=23 // pred_region
          %s137 = sand.u32 %s25, 1
          %s138 = scalar_lea.sflag [#allocation3], %s137
          %s139 = sand.u32 %s25, 1
          %s140 = smul.addr %s139, 2
          %s141 = scalar_lea.vmem [#allocation2], %s140
          %s143 = ssub.s32 32, 32
          %144 = vsyncadd %s138, %s143
          %s145 = smul.addr %s15, 32
          %s146 = scalar_lea.hbm %s0, %s145
          %s148 = sshll.u32 %s141, 4
          %s149 = int_to_ptr.vmem [resolvable:$true] %s148
          %151 = dma.hbm_to_vmem [thread:$0]  %s146, 32, %s149, %s138
        $region28: #{tpu_custom_call.1} parent=23 // pred_fallthru
          _
      $region24: #{tpu_custom_call.1} parent=5 // pred_fallthru
        _
      %p152 = scmp.le.s32.totalorder 1, %s15
      %p153 = scmp.lt.s32.totalorder %s15, 3
      %p154 = pnand %p152, %p153
      %p155 = pneg %p154
      // Predicated region
      $region29: #{tpu_custom_call.1} parent=5 // pred_check
        _
      $region30: #{tpu_custom_call.1} parent=5 // pred_check_branch
        %157 = sbr.rel (%p154) target = $region32
      $region31: #{tpu_custom_call.1} parent=5 // pred_region
        %s158 = ssub.s32 %s15, 1
        %s159 = sand.u32 %s28, 1
        %s160 = scalar_lea.sflag [#allocation3], %s159
        %s161 = sand.u32 %s28, 1
        %s162 = smul.addr %s161, 2
        %s163 = scalar_lea.vmem [#allocation2], %s162
        // Predicated region
        $region33: #{tpu_custom_call.1} parent=31 // pred_check
          %p164 = pneg %p41
        $region34: #{tpu_custom_call.1} parent=31 // pred_check_branch
          %166 = sbr.rel (%p164) target = $region36
        $region35: #{tpu_custom_call.1} parent=31 // pred_region
          %167 = dma.done %s160, 32
        $region36: #{tpu_custom_call.1} parent=31 // pred_fallthru
          _
        %s168 = sand.u32 %s28, 1
        %s169 = scalar_lea.sflag [#allocation3], %s168
        %s170 = sand.u32 %s28, 1
        %s171 = smul.addr %s170, 2
        %s172 = scalar_lea.vmem [#allocation2], %s171
        %p173 = pneg %p41
        %p174 = pneg %p38
        %p175 = pneg %p62
        %p176 = pneg %p59
        %p177 = pneg %p83
        %p178 = pneg %p80
        %p179 = pneg %p109
        %p180 = pneg %p106
        %s181 = sand.u32 %s96, 1
        %s182 = scalar_lea.sflag [#allocation4], %s181
        %s183 = sand.u32 %s96, 1
        %s184 = smul.addr %s183, 2
        %s185 = scalar_lea.vmem [#allocation5], %s184
        %v186 = vld [vmem:[%s163] sm:$0x3]
        %vm187 = vcmask 1041408
        %v188 = vsel %vm187, %v186, 0.0
        %189 = vadd.xlane.f32.xlu0 %v188
        %v190 = vpop.xlane.xlu0 %189
        %v191 = vrot.slane %v190, 4
        %v192 = vadd.f32 %v190, %v191
        %v193 = vrot.slane %v192, 2
        %v194 = vadd.f32 %v192, %v193
        %v195 = vrot.slane %v194, 1
        %v196 = vadd.f32 %v194, %v195
        %v197 = vmul.f32 %v186, %v186
        %v198 = vsel %vm187, %v197, 0.0
        %199 = vadd.xlane.f32.xlu0 %v198
        %v200 = vpop.xlane.xlu0 %199
        %v201 = vrot.slane %v200, 4
        %v202 = vadd.f32 %v200, %v201
        %v203 = vrot.slane %v202, 2
        %v204 = vadd.f32 %v202, %v203
        %v205 = vrot.slane %v204, 1
        %v206 = vadd.f32 %v204, %v205
        %v207 = vmul.f32 %v196, 0.00390625
        %v208 = vmul.f32 %v206, 0.00390625
        %v209 = vmul.f32 %v207, %v207
        %v210 = vsub.f32 %v208, %v209
        %v211 = vmax.f32 %v210, 0.0
        %v212 = vadd.f32 %v211, 1e-06
        %v213 = vrsqrt.pop %v212
        %v214 = vld [vmem:[%s1] sm:$0x3]
        %v215 = vld [vmem:[%s2] sm:$0x3]
        %v216 = vmul.f32 %v214, %v213
        %v217 = vmul.f32 %v207, %v216
        %v218 = vsub.f32 %v215, %v217
        %v219 = vmul.f32 %v186, %v216
        %v220 = vadd.f32 %v219, %v218
        %221 = vst [vmem:[%s185] sm:$0x3] %v220
        %s222 = sand.u32 %s96, 1
        %s223 = scalar_lea.sflag [#allocation4], %s222
        %s224 = sand.u32 %s96, 1
        %s225 = smul.addr %s224, 2
        %s226 = scalar_lea.vmem [#allocation5], %s225
        // Predicated region
        $region37: #{tpu_custom_call.1} parent=31 // pred_check
          %p227 = pneg %p106
        $region38: #{tpu_custom_call.1} parent=31 // pred_check_branch
          %229 = sbr.rel (%p227) target = $region40
        $region39: #{tpu_custom_call.1} parent=31 // pred_region
          %s231 = ssub.s32 32, 32
          %232 = vsyncadd %s223, %s231
          %s233 = smul.addr %s20, 32
          %s234 = scalar_lea.hbm %s3, %s233
          %s236 = sshll.u32 %s226, 4
          %s237 = int_to_ptr.vmem [resolvable:$true] %s236
          %239 = dma.vmem_to_hbm [thread:$0]  %s237, 32, %s234, %s223
        $region40: #{tpu_custom_call.1} parent=31 // pred_fallthru
          _
      $region32: #{tpu_custom_call.1} parent=5 // pred_fallthru
        _
      %p240 = scmp.le.s32.totalorder 2, %s15
      // Predicated region
      $region41: #{tpu_custom_call.1} parent=5 // pred_check
        %p241 = pneg %p240
      $region42: #{tpu_custom_call.1} parent=5 // pred_check_branch
        %243 = sbr.rel (%p241) target = $region44
      $region43: #{tpu_custom_call.1} parent=5 // pred_region
        %s244 = ssub.s32 %s15, 2
        // Predicated region
        $region45: #{tpu_custom_call.1} parent=43 // pred_check
          %p245 = pneg %p112
        $region46: #{tpu_custom_call.1} parent=43 // pred_check_branch
          %247 = sbr.rel (%p245) target = $region48
        $region47: #{tpu_custom_call.1} parent=43 // pred_region
          %s248 = sand.u32 %s97, 1
          %s249 = scalar_lea.sflag [#allocation4], %s248
          %s250 = sand.u32 %s97, 1
          %s251 = smul.addr %s250, 2
          %s252 = scalar_lea.vmem [#allocation5], %s251
          %253 = dma.done %s249, 32
        $region48: #{tpu_custom_call.1} parent=43 // pred_fallthru
          _
      $region44: #{tpu_custom_call.1} parent=5 // pred_fallthru
        _
    $region6: #{tpu_custom_call.1} parent=1 // loop_footer
      %s19 = sadd.s32 1, %s15
    $region7: #{tpu_custom_call.1} parent=1 // loop_footer_branch
      %14 = sbr.rel target = $region3
    $region8: #{tpu_custom_call.1} parent=1 // loop_exit
      _
    %254 = vsyncpa [#allocation3], 1
    %s255 = scalar_lea.sflag [#allocation3], 1
    %256 = vsyncpa %s255, 1
    %257 = vsyncpa [#allocation4], 1
    %s258 = scalar_lea.sflag [#allocation4], 1
    %259 = vsyncpa %s258, 1

</llo_original>
